<compile_context>
chip_gen: v6e
topology: v6e:2x2x1
jax: 0.10.0
libtpu: 0.0.40
codegen_flags: <defaults>
</compile_context>

<pallas_src>
import functools
import numpy as np
import jax
import jax.numpy as jnp
from jax import lax
from jax.experimental import pallas as pl
from jax.experimental.pallas import tpu as pltpu

F32 = jnp.float32
_NEG = -1e30  # "minus infinity" that stays finite / NaN-free in f32 arithmetic


def _vmem_full():
    return pl.BlockSpec(memory_space=pltpu.MemorySpace.VMEM)


def _round_up(x, m):
    return ((x + m - 1) // m) * m


# ----------------------------------------------------------------------------
# Kernel 1: fused masked L1 for mel features (feat + feat_postnet), row-tiled.
# Inputs are flattened to (R = B*T_mel, n_mels); the mask is (R, 1) and is
# broadcast across the mel lanes inside the kernel.  Full tiles skip the
# row-validity masking (fast path); only the last tile guards OOB padding.
# TODO(synk): on v7x emit per-tile partials + "parallel" axis for megacore.
# ----------------------------------------------------------------------------
def _feats_l1_kernel(total_rows, tile_rows, n_cols, has_post, *refs):
    if has_post:
        pred_ref, post_ref, tgt_ref, m_ref, a1_ref, a2_ref, cnt_ref = refs
    else:
        pred_ref, tgt_ref, m_ref, a1_ref, cnt_ref = refs
        post_ref = None
        a2_ref = None

    i = pl.program_id(0)
    last = pl.num_programs(0) - 1

    @pl.when(i == 0)
    def _():
        a1_ref[...] = jnp.zeros_like(a1_ref)
        cnt_ref[...] = jnp.zeros_like(cnt_ref)
        if has_post:
            a2_ref[...] = jnp.zeros_like(a2_ref)

    p = pred_ref[...].astype(F32)
    t = tgt_ref[...].astype(F32)
    m = m_ref[...].astype(F32)                              # (TR, 1)
    if has_post:
        q = post_ref[...].astype(F32)

    @pl.when(i < last)                                      # full tiles
    def _():
        a1_ref[...] += jnp.sum(jnp.abs(p - t) * m, keepdims=True)
        cnt_ref[...] += jnp.sum(m, keepdims=True) * float(n_cols)
        if has_post:
            a2_ref[...] += jnp.sum(jnp.abs(q - t) * m, keepdims=True)

    @pl.when(i == last)                                     # last / partial tile
    def _():
        row = lax.broadcasted_iota(jnp.int32, p.shape, 0) + i * tile_rows
        valid = row < total_rows                            # (TR, C)
        w = jnp.where(valid, m, 0.0)                        # NaN-safe, (TR, C)
        a1_ref[...] += jnp.sum(jnp.where(valid, jnp.abs(p - t), 0.0) * w,
                               keepdims=True)
        cnt_ref[...] += jnp.sum(w, keepdims=True)
        if has_post:
            a2_ref[...] += jnp.sum(jnp.where(valid, jnp.abs(q - t), 0.0) * w,
                                   keepdims=True)


def feats_l1_reduce(pred2d, tgt2d, mask_rows, post2d=None):
    R, C = pred2d.shape
    TR = R if R <= 2048 else 2048
    grid = (pl.cdiv(R, TR),)
    has_post = post2d is not None
    data_spec = pl.BlockSpec((TR, C), lambda i: (i, 0))
    mask_spec = pl.BlockSpec((TR, 1), lambda i: (i, 0))
    out_spec = pl.BlockSpec((1, 1), lambda i: (0, 0))
    if has_post:
        inputs = (pred2d, post2d, tgt2d, mask_rows)
        in_specs = [data_spec, data_spec, data_spec, mask_spec]
        n_out = 3
    else:
        inputs = (pred2d, tgt2d, mask_rows)
        in_specs = [data_spec, data_spec, mask_spec]
        n_out = 2
    outs = pl.pallas_call(
        functools.partial(_feats_l1_kernel, R, TR, C, has_post),
        grid=grid,
        in_specs=in_specs,
        out_specs=tuple(out_spec for _ in range(n_out)),
        out_shape=tuple(jax.ShapeDtypeStruct((1, 1), F32) for _ in range(n_out)),
        compiler_params=pltpu.CompilerParams(dimension_semantics=("arbitrary",)),
    )(*inputs)
    if has_post:
        return outs[0][0, 0], outs[1][0, 0], outs[2][0, 0]
    return outs[0][0, 0], outs[1][0, 0]


# ----------------------------------------------------------------------------
# Kernel 2: fused tiny reductions — duration (pdur/sdur) + pitch + energy + 2xKL
# in a single launch (these tensors are tiny; the cost was launch overhead).
# ----------------------------------------------------------------------------
def _small_fused_kernel(ldp_ref, dt_ref, sm_ref,
                        pp_ref, pt_ref, ep_ref, et_ref, lm_ref,
                        mua_ref, lva_ref, mus_ref, lvs_ref,
                        pdur_ref, sdur_ref, psse_ref, esse_ref, cnt_ref,
                        kla_ref, kls_ref):
    # durations — matches torch: only the TARGETS are masked; pdur is mean over
    # all B*T elements, sdur is MSE over the B sentence sums.
    ldp = ldp_ref[...].astype(F32)
    dt = dt_ref[...].astype(F32) * sm_ref[...].astype(F32)
    ldt = jnp.log(dt + 1.0)
    diff = ldp - ldt
    pdur_ref[...] = jnp.sum(diff * diff, keepdims=True)
    dp = jnp.maximum(jnp.exp(ldp) - 1.0, 0.0)
    sd = (jnp.log(jnp.sum(dp, axis=-1, keepdims=True) + 1.0)
          - jnp.log(jnp.sum(dt, axis=-1, keepdims=True) + 1.0))
    sdur_ref[...] = jnp.sum(sd * sd, keepdims=True)

    # pitch / energy masked MSE (== masked_select then mse)
    lm = lm_ref[...].astype(F32)
    dpp = (pp_ref[...].astype(F32) - pt_ref[...].astype(F32)) * lm
    dee = (ep_ref[...].astype(F32) - et_ref[...].astype(F32)) * lm
    psse_ref[...] = jnp.sum(dpp * dpp, keepdims=True)
    esse_ref[...] = jnp.sum(dee * dee, keepdims=True)
    cnt_ref[...] = jnp.sum(lm, keepdims=True)

    # CVAE KL sums (0.5/B applied in the wrapper)
    mua = mua_ref[...].astype(F32)
    lva = lva_ref[...].astype(F32)
    mus = mus_ref[...].astype(F32)
    lvs = lvs_ref[...].astype(F32)
    kla_ref[...] = jnp.sum(jnp.exp(lva) + mua * mua - 1.0 - lva, keepdims=True)
    kls_ref[...] = jnp.sum(jnp.exp(lvs) + mus * mus - 1.0 - lvs, keepdims=True)


def fused_small_reduce(ldp, dt, sm, pp, pt, ep, et, lm, mua, lva, mus, lvs):
    outs = pl.pallas_call(
        _small_fused_kernel,
        in_specs=[_vmem_full()] * 12,
        out_specs=tuple(_vmem_full() for _ in range(7)),
        out_shape=tuple(jax.ShapeDtypeStruct((1, 1), F32) for _ in range(7)),
    )(ldp, dt, sm, pp, pt, ep, et, lm, mua, lva, mus, lvs)
    return tuple(o[0, 0] for o in outs)


# ----------------------------------------------------------------------------
# Kernel 3: BinLoss reductions (sum log soft where hard==1, sum hard), row-tiled
# with a full-tile fast path.
# ----------------------------------------------------------------------------
def _bin_kernel(total_rows, tile_rows, hard_ref, soft_ref, ls_ref, hs_ref):
    i = pl.program_id(0)
    last = pl.num_programs(0) - 1

    @pl.when(i == 0)
    def _():
        ls_ref[...] = jnp.zeros_like(ls_ref)
        hs_ref[...] = jnp.zeros_like(hs_ref)

    h = hard_ref[...].astype(F32)
    s = soft_ref[...].astype(F32)
    logs = jnp.log(jnp.maximum(s, 1e-12))

    @pl.when(i < last)                                      # full tiles
    def _():
        ls_ref[...] += jnp.sum(jnp.where(h == 1.0, logs, 0.0), keepdims=True)
        hs_ref[...] += jnp.sum(h, keepdims=True)

    @pl.when(i == last)                                     # last / partial tile
    def _():
        row = lax.broadcasted_iota(jnp.int32, h.shape, 0) + i * tile_rows
        valid = row < total_rows
        sel = jnp.logical_and(valid, h == 1.0)
        ls_ref[...] += jnp.sum(jnp.where(sel, logs, 0.0), keepdims=True)
        hs_ref[...] += jnp.sum(jnp.where(valid, h, 0.0), keepdims=True)


def bin_reduce(hard2d, soft2d):
    R, C = hard2d.shape
    TR = R if R <= 2048 else 2048
    grid = (pl.cdiv(R, TR),)
    outs = pl.pallas_call(
        functools.partial(_bin_kernel, R, TR),
        grid=grid,
        in_specs=[pl.BlockSpec((TR, C), lambda i: (i, 0)),
                  pl.BlockSpec((TR, C), lambda i: (i, 0))],
        out_specs=tuple(pl.BlockSpec((1, 1), lambda i: (0, 0)) for _ in range(2)),
        out_shape=tuple(jax.ShapeDtypeStruct((1, 1), F32) for _ in range(2)),
        compiler_params=pltpu.CompilerParams(dimension_semantics=("arbitrary",)),
    )(hard2d, soft2d)
    return outs[0][0, 0], outs[1][0, 0]


# ----------------------------------------------------------------------------
# Kernel 4: ForwardSum (CTC) loss, fully on device, batch-vectorized.
#   Phase 1 (per batch row, unrolled over the static B): blank-folded masked
#     log-softmax on the (Tm, Tt) tile, widened to W lanes and stored
#     time-major in the em scratch (row = b*Tm_pad + t).  The blank log-prob
#     is folded into lane W-1 (never a valid label lane since W >= Tt+2).
#   Phase 2: single fori_loop over Tm with (B, W) state tiles (batch on the
#     sublanes), per-step sublane-strided em load, shared logsumexp and
#     per-row `t < query_len` masking.
# TODO(synk): for very long utterances stream the em scratch in Tm chunks
#             (double-buffered) to fit v7x's 64 MiB VMEM.
# ----------------------------------------------------------------------------
def _lse2(a, b):
    m = jnp.maximum(a, b)
    return m + jnp.log(jnp.exp(a - m) + jnp.exp(b - m))


def _ctc_kernel(blank, B, Tm, Tt, W, Tm_pad,
                kl_ref, ql_ref, x_ref, o_ref, em_ref):
    # ---- phase 1: emissions ----
    for b in range(B):                                   # static, unrolls
        xb = x_ref[b].astype(F32)                        # (Tm, Tt)
        kb = kl_ref[pl.ds(b, 1), :]                      # (1, 1) int32
        col = lax.broadcasted_iota(jnp.int32, (Tm, Tt), 1)
        validb = col < kb                                # labels 1..K  -> cols 0..K-1
        xm = jnp.where(validb, xb, _NEG)
        mx = jnp.maximum(jnp.max(xm, axis=-1, keepdims=True), blank)   # (Tm, 1)
        lse = mx + jnp.log(jnp.exp(blank - mx)
                           + jnp.sum(jnp.exp(xm - mx), axis=-1, keepdims=True))
        em_b = jnp.where(validb, xb - lse, _NEG)         # (Tm, Tt)
        em_w = jnp.concatenate(
            [em_b, jnp.full((Tm, W - Tt), _NEG, F32)], axis=1)          # (Tm, W)
        lanew = lax.broadcasted_iota(jnp.int32, (Tm, W), 1)
        em_w = jnp.where(lanew == W - 1, blank - lse, em_w)   # fold log p(blank)
        em_ref[pl.ds(b * Tm_pad, Tm), :] = em_w

    # ---- phase 2: batched alpha recursion ----
    kvec = kl_ref[...]                                   # (B, 1) int32
    qvec = ql_ref[...]                                   # (B, 1) int32
    lane = lax.broadcasted_iota(jnp.int32, (B, W), 1)
    lane0 = lane == 0

    em0 = em_ref[pl.ds(0, B, stride=Tm_pad), :]          # (B, W) at t = 0
    lb0 = em0[:, W - 1:W]                                # (B, 1) log p(blank)
    a_b = jnp.where(lane0, lb0, _NEG)                    # blank state, 0 labels
    b_n = jnp.where(lane0, em0[:, 0:1], _NEG)            # non-blank state, lbl 1

    def body(t, carry):
        a_b, b_n = carry
        emt = em_ref[pl.ds(t, B, stride=Tm_pad), :]      # (B, W)
        lbt = emt[:, W - 1:W]                            # (B, 1)
        sh = pltpu.roll(b_n, shift=1, axis=1)            # beta_n[c-1]
        sh = jnp.where(lane0, _NEG, sh)
        s2 = _lse2(a_b, sh)                              # shared logsumexp
        new_b = lbt + s2                                 # stay blank / from lbl
        new_n = emt + _lse2(b_n, s2)                     # stay / blank / skip
        act = t < qvec                                   # (B, 1) per-row active
        a_b = jnp.where(act, jnp.maximum(new_b, _NEG), a_b)
        b_n = jnp.where(act, jnp.maximum(new_n, _NEG), b_n)
        return a_b, b_n

    a_b, b_n = lax.fori_loop(1, Tm, body, (a_b, b_n), unroll=2)

    ll_b = jnp.max(jnp.where(lane == kvec, a_b, _NEG), axis=1, keepdims=True)
    ll_n = jnp.max(jnp.where(lane == kvec - 1, b_n, _NEG), axis=1, keepdims=True)
    ll = _lse2(ll_b, ll_n)
    kf = jnp.maximum(kvec.astype(F32), 1.0)
    bad = (ll < -1e29) | (kvec <= 0) | (qvec <= 0)       # zero_infinity / K==0
    o_ref[...] = jnp.where(bad, 0.0, -ll / kf)


def ctc_forward_sum(attn_logprob, key_lens, query_lens, blank_logprob=-1.0):
    """ForwardSumLoss: mean over batch of CTC(-loglik / K), zero_infinity."""
    B = attn_logprob.shape[0]
    Tm, Tt = attn_logprob.shape[-2], attn_logprob.shape[-1]
    x = attn_logprob.reshape(B, Tm, Tt)       # drop the size-1 head dim (free)
    W = _round_up(Tt + 2, 128)                # lane K always exists; W-1 = blank
    Tm_pad = _round_up(Tm, 8)
    kl = jnp.asarray(key_lens, jnp.int32).reshape(B, 1)
    ql = jnp.asarray(query_lens, jnp.int32).reshape(B, 1)
    per_b = pl.pallas_call(
        functools.partial(_ctc_kernel, float(blank_logprob), B, Tm, Tt, W, Tm_pad),
        in_specs=[_vmem_full(), _vmem_full(), _vmem_full()],
        out_specs=_vmem_full(),
        out_shape=jax.ShapeDtypeStruct((B, 1), F32),
        scratch_shapes=[pltpu.VMEM((B * Tm_pad, W), F32)],
        compiler_params=pltpu.CompilerParams(
            vmem_limit_bytes=48 * 1024 * 1024),
    )(kl, ql, x)
    return jnp.mean(per_b)


# ----------------------------------------------------------------------------
# Host-side helpers (match the torch module)
# ----------------------------------------------------------------------------
def linear_buildup(n_iter, n_stop=25000, n_up=5000, start=0.0001, stop=1.0):
    Llow = np.ones(n_up) * start
    Lhigh = np.ones(n_iter - n_stop) * stop
    Lramp = np.linspace(start, stop, n_stop - n_up)
    return np.concatenate((Llow, Lramp, Lhigh))


class FastSpeech2LossPallas:
    """JAX/Pallas port of FastSpeech2Loss.forward."""

    def __init__(self, n_iter, config, is_finetune=False):
        self.is_finetune = is_finetune
        self.linbuild = config['linbuild']
        if is_finetune:
            self.L = 0.0005
        else:
            self.L = linear_buildup(
                n_iter=n_iter, n_stop=self.linbuild['n_stop'],
                n_up=self.linbuild['n_up'], start=self.linbuild['start'],
                stop=self.linbuild['stop'])
        self.binarization_loss_enable_steps = config['binarization_loss_enable_steps']
        self.binarization_loss_warmup_steps = config['binarization_loss_warmup_steps']
        self.dur_loss_lambda = config['dur_loss_lambda']
        self.pitch_feature_level = config['pitch_feature_level']
        self.energy_feature_level = config['energy_feature_level']
        self.blank_logprob = -1.0

    # ---- feats (masked L1, pred + postnet fused) ----
    def _feats_losses(self, feats_pred, feats_tgt, masks, postnet_pred):
        B, Tm, C = feats_pred.shape
        R = B * Tm
        if masks is not None:
            mrow = masks.astype(F32).reshape(R, 1)
        else:
            mrow = jnp.ones((R, 1), F32)
        if postnet_pred is not None:
            a1, a2, cnt = feats_l1_reduce(feats_pred.reshape(R, C),
                                          feats_tgt.reshape(R, C), mrow,
                                          post2d=postnet_pred.reshape(R, C))
            return {'feat': a1 / cnt, 'feat_postnet': a2 / cnt}
        a1, cnt = feats_l1_reduce(feats_pred.reshape(R, C),
                                  feats_tgt.reshape(R, C), mrow)
        return {'feat': a1 / cnt}

    # ---- alignment (ForwardSum CTC + BinLoss) ----
    def _align_losses(self, attn_matrix, input_lens, output_lens, step):
        attn_soft, attn_hard, _, attn_logprob = attn_matrix
        loss = {'ctc': ctc_forward_sum(attn_logprob, input_lens, output_lens,
                                       self.blank_logprob)}
        if step < self.binarization_loss_enable_steps:
            w = 0.0
        else:
            w = min((step - self.binarization_loss_enable_steps)
                    / self.binarization_loss_warmup_steps, 1.0) * 1.0
        if w > 0.0:
            B, _, Tm, Tt = attn_hard.shape
            logsum, hsum = bin_reduce(attn_hard.reshape(B * Tm, Tt),
                                      attn_soft.reshape(B * Tm, Tt))
            loss['bin'] = jnp.where(hsum > 0, -logsum / hsum, 0.0) * w
        else:
            # skip the launch + two full HBM reads while the weight is 0
            loss['bin'] = jnp.zeros((), F32)
        return loss

    # ---- top level ----
    def __call__(self, predictions, targets, is_joint=False, step=None):
        (feats_predictions, postnet_feats_predictions, log_duration_predictions,
         pitch_predictions, energy_predictions, src_lens, src_masks, feats_lens,
         feats_masks, accent_probs, attn_outs) = predictions[:-1]
        (feats_targets, word_boundaries, duration_targets,
         pitch_targets, energy_targets) = targets

        src_masks = jnp.logical_not(src_masks)
        feats_masks = jnp.logical_not(feats_masks)
        feats_targets = feats_targets[:, :feats_masks.shape[1], :]
        feats_masks = feats_masks[:, :feats_masks.shape[1]]   # no-op, mirrors torch

        losses = self._feats_losses(feats_predictions, feats_targets,
                                    feats_masks if is_joint is False else None,
                                    postnet_feats_predictions)
        if step is not None:
            if attn_outs is not None:
                losses.update(self._align_losses(attn_outs, src_lens,
                                                 feats_lens, step))

            lvl_masks = (src_masks if self.pitch_feature_level == 'phoneme_level'
                         else feats_masks)
            if accent_probs is not None:
                mu_acc, lv_acc, mu_spk, lv_spk = accent_probs
            else:
                z = jnp.zeros((1, 1), F32)
                mu_acc = lv_acc = mu_spk = lv_spk = z

            (pdur_sse, sdur_sse, p_sse, e_sse, cnt,
             kl_acc, kl_spk) = fused_small_reduce(
                log_duration_predictions, duration_targets,
                src_masks.astype(F32),
                pitch_predictions, pitch_targets,
                energy_predictions, energy_targets, lvl_masks.astype(F32),
                mu_acc, lv_acc, mu_spk, lv_spk)

            if accent_probs is not None:
                L = self.L if isinstance(self.L, float) else float(self.L[step])
                Bk = mu_acc.shape[0]
                losses['cvae'] = L * 0.5 * (kl_acc + kl_spk) / Bk

            Bd, Td = log_duration_predictions.shape
            losses['pdur'] = pdur_sse / (Bd * Td)
            # TODO(synk): phone2words() is not defined in the reference source; the
            # wdur branch stays disabled exactly like the torch guard (lambda == 0).
            losses['wdur'] = jnp.zeros((1,), F32)
            losses['sdur'] = (sdur_sse / Bd if self.dur_loss_lambda['sdur'] > 0
                              else jnp.zeros((1,), F32))
            losses['pitch'] = p_sse / cnt
            losses['energy'] = e_sse / cnt
        return losses


# ----------------------------------------------------------------------------
if __name__ == "__main__":
    key = jax.random.PRNGKey(0)
    ks = jax.random.split(key, 16)
    B, T_text, T_mel, n_mels, D = 2, 8, 16, 16, 8

    src_lens = jnp.array([8, 6], jnp.int32)
    feats_lens = jnp.array([16, 12], jnp.int32)
    src_masks = jnp.arange(T_text)[None, :] >= src_lens[:, None]      # True = padding
    feats_masks = jnp.arange(T_mel)[None, :] >= feats_lens[:, None]   # True = padding

    feats_pred = jax.random.normal(ks[0], (B, T_mel, n_mels), F32)
    postnet_pred = jax.random.normal(ks[1], (B, T_mel, n_mels), F32)
    log_dur_pred = 0.5 * jax.random.normal(ks[2], (B, T_text), F32)
    pitch_pred = jax.random.normal(ks[3], (B, T_text), F32)
    energy_pred = jax.random.normal(ks[4], (B, T_text), F32)
    mu_acc = jax.random.normal(ks[5], (B, D), F32)
    logvar_acc = 0.1 * jax.random.normal(ks[6], (B, D), F32)
    mu_spk = jax.random.normal(ks[7], (B, D), F32)
    logvar_spk = 0.1 * jax.random.normal(ks[8], (B, D), F32)

    attn_soft = jax.nn.softmax(
        jax.random.normal(ks[9], (B, 1, T_mel, T_text), F32), axis=-1)
    attn_logprob = jax.nn.log_softmax(
        jax.random.normal(ks[10], (B, 1, T_mel, T_text), F32), axis=-1)
    hard = np.zeros((B, 1, T_mel, T_text), np.float32)
    for b in range(B):
        sl, fl = int(src_lens[b]), int(feats_lens[b])
        for t in range(fl):
            hard[b, 0, t, min(t * sl // fl, sl - 1)] = 1.0
    attn_hard = jnp.asarray(hard)
    attn_outs = (attn_soft, attn_hard, None, attn_logprob)
    accent_probs = (mu_acc, logvar_acc, mu_spk, logvar_spk)

    predictions = (feats_pred, postnet_pred, log_dur_pred, pitch_pred, energy_pred,
                   src_lens, src_masks, feats_lens, feats_masks, accent_probs,
                   attn_outs, None)   # trailing element dropped via predictions[:-1]

    feats_tgt = jax.random.normal(ks[11], (B, T_mel + 4, n_mels), F32)
    duration_tgt = jax.random.randint(ks[12], (B, T_text), 1, 4).astype(F32)
    pitch_tgt = jax.random.normal(ks[13], (B, T_text), F32)
    energy_tgt = jax.random.normal(ks[14], (B, T_text), F32)
    word_boundaries = [[0, 4, T_text]] * B   # unused (wdur disabled)
    targets = (feats_tgt, word_boundaries, duration_tgt, pitch_tgt, energy_tgt)

    config = {
        'linbuild': {'n_stop': 250, 'n_up': 50, 'start': 1e-4, 'stop': 1.0},
        'binarization_loss_enable_steps': 100,
        'binarization_loss_warmup_steps': 100,
        'dur_loss_lambda': {'wdur': 0.0, 'sdur': 1.0},
        'pitch_feature_level': 'phoneme_level',
        'energy_feature_level': 'phoneme_level',
    }
    loss_mod = FastSpeech2LossPallas(n_iter=300, config=config, is_finetune=False)
    losses = loss_mod(predictions, targets, is_joint=False, step=150)
    for v in losses.values():
        jax.block_until_ready(v)
    print("KERNEL_OK")
</pallas_src>

<mosaic_0001>
module attributes {stable_mosaic.version = 11 : i64} {
  func.func @_feats_l1_kernel(%arg0: i32, %arg1: memref<32x16xf32, #tpu.memory_space<vmem>>, %arg2: memref<32x16xf32, #tpu.memory_space<vmem>>, %arg3: memref<32x16xf32, #tpu.memory_space<vmem>>, %arg4: memref<32x1xf32, #tpu.memory_space<vmem>>, %arg5: memref<1x1xf32, #tpu.memory_space<vmem>>, %arg6: memref<1x1xf32, #tpu.memory_space<vmem>>, %arg7: memref<1x1xf32, #tpu.memory_space<vmem>>) attributes {dimension_semantics = [#tpu.dimension_semantics<arbitrary>], iteration_bounds = array<i64: 1>, scalar_prefetch = 0 : i64, scratch_operands = 0 : i64, tpu.core_type = #tpu.core_type<tc>, window_params = [{transform_indices = @transform_0, window_bounds = array<i64: 32, 16>}, {transform_indices = @transform_1, window_bounds = array<i64: 32, 16>}, {transform_indices = @transform_2, window_bounds = array<i64: 32, 16>}, {transform_indices = @transform_3, window_bounds = array<i64: 32, 1>}, {pipeline_mode = #tpu.pipeline_mode<synchronous>, transform_indices = @transform_4, window_bounds = array<i64: 1, 1>}, {pipeline_mode = #tpu.pipeline_mode<synchronous>, transform_indices = @transform_5, window_bounds = array<i64: 1, 1>}, {pipeline_mode = #tpu.pipeline_mode<synchronous>, transform_indices = @transform_6, window_bounds = array<i64: 1, 1>}]} {
    %c0_i32 = arith.constant 0 : i32
    %0 = arith.cmpi eq, %arg0, %c0_i32 : i32
    %1 = arith.extui %0 : i1 to i32
    %c0_i32_0 = arith.constant 0 : i32
    %2 = arith.cmpi ne, %1, %c0_i32_0 : i32
    scf.if %2 {
      %cst = arith.constant 0.000000e+00 : f32
      %13 = vector.broadcast %cst : f32 to vector<1x1xf32>
      %c0_12 = arith.constant 0 : index
      %c0_13 = arith.constant 0 : index
      %14 = vector.load %arg5[%c0_12, %c0_13] : memref<1x1xf32, #tpu.memory_space<vmem>>, vector<1x1xf32>
      tpu.vector_store %arg5[%c0_12, %c0_13], %13 {strides = array<i32>} : memref<1x1xf32, #tpu.memory_space<vmem>>, vector<1x1xf32>,
      %cst_14 = arith.constant 0.000000e+00 : f32
      %15 = vector.broadcast %cst_14 : f32 to vector<1x1xf32>
      %c0_15 = arith.constant 0 : index
      %c0_16 = arith.constant 0 : index
      %16 = vector.load %arg7[%c0_15, %c0_16] : memref<1x1xf32, #tpu.memory_space<vmem>>, vector<1x1xf32>
      tpu.vector_store %arg7[%c0_15, %c0_16], %15 {strides = array<i32>} : memref<1x1xf32, #tpu.memory_space<vmem>>, vector<1x1xf32>,
      %cst_17 = arith.constant 0.000000e+00 : f32
      %17 = vector.broadcast %cst_17 : f32 to vector<1x1xf32>
      %c0_18 = arith.constant 0 : index
      %c0_19 = arith.constant 0 : index
      %18 = vector.load %arg6[%c0_18, %c0_19] : memref<1x1xf32, #tpu.memory_space<vmem>>, vector<1x1xf32>
      tpu.vector_store %arg6[%c0_18, %c0_19], %17 {strides = array<i32>} : memref<1x1xf32, #tpu.memory_space<vmem>>, vector<1x1xf32>,
    } else {
    }
    %c0 = arith.constant 0 : index
    %c0_1 = arith.constant 0 : index
    %3 = vector.load %arg1[%c0, %c0_1] : memref<32x16xf32, #tpu.memory_space<vmem>>, vector<32x16xf32>
    %c0_2 = arith.constant 0 : index
    %c0_3 = arith.constant 0 : index
    %4 = vector.load %arg3[%c0_2, %c0_3] : memref<32x16xf32, #tpu.memory_space<vmem>>, vector<32x16xf32>
    %c0_4 = arith.constant 0 : index
    %c0_5 = arith.constant 0 : index
    %5 = vector.load %arg4[%c0_4, %c0_5] : memref<32x1xf32, #tpu.memory_space<vmem>>, vector<32x1xf32>
    %c0_6 = arith.constant 0 : index
    %c0_7 = arith.constant 0 : index
    %6 = vector.load %arg2[%c0_6, %c0_7] : memref<32x16xf32, #tpu.memory_space<vmem>>, vector<32x16xf32>
    %c0_i32_8 = arith.constant 0 : i32
    %7 = arith.cmpi slt, %arg0, %c0_i32_8 : i32
    %8 = arith.extui %7 : i1 to i32
    %c0_i32_9 = arith.constant 0 : i32
    %9 = arith.cmpi ne, %8, %c0_i32_9 : i32
    scf.if %9 {
      %c0_12 = arith.constant 0 : index
      %c0_13 = arith.constant 0 : index
      %13 = vector.load %arg5[%c0_12, %c0_13] : memref<1x1xf32, #tpu.memory_space<vmem>>, vector<1x1xf32>
      %14 = arith.subf %3, %4 : vector<32x16xf32>
      %15 = math.absf %14 : vector<32x16xf32>
      %16 = vector.broadcast %5 : vector<32x1xf32> to vector<32x16xf32>
      %17 = arith.mulf %15, %16 : vector<32x16xf32>
      %18 = vector.shape_cast %17 : vector<32x16xf32> to vector<1x32x16xf32>
      %cst = arith.constant dense<0.000000e+00> : vector<1xf32>
      %19 = vector.multi_reduction <add>, %18, %cst [1, 2] : vector<1x32x16xf32> to vector<1xf32>
      %20 = vector.shape_cast %19 : vector<1xf32> to vector<1x1x1xf32>
      %21 = vector.extract %20[0, 0, 0] : f32 from vector<1x1x1xf32>
      %22 = vector.broadcast %21 : f32 to vector<1x1xf32>
      %23 = arith.addf %13, %22 : vector<1x1xf32>
      %c0_14 = arith.constant 0 : index
      %c0_15 = arith.constant 0 : index
      %24 = vector.load %arg5[%c0_14, %c0_15] : memref<1x1xf32, #tpu.memory_space<vmem>>, vector<1x1xf32>
      tpu.vector_store %arg5[%c0_14, %c0_15], %23 {strides = array<i32>} : memref<1x1xf32, #tpu.memory_space<vmem>>, vector<1x1xf32>,
      %c0_16 = arith.constant 0 : index
      %c0_17 = arith.constant 0 : index
      %25 = vector.load %arg7[%c0_16, %c0_17] : memref<1x1xf32, #tpu.memory_space<vmem>>, vector<1x1xf32>
      %26 = vector.shape_cast %5 : vector<32x1xf32> to vector<1x32x1xf32>
      %cst_18 = arith.constant dense<0.000000e+00> : vector<1xf32>
      %27 = vector.multi_reduction <add>, %26, %cst_18 [1, 2] : vector<1x32x1xf32> to vector<1xf32>
      %28 = vector.shape_cast %27 : vector<1xf32> to vector<1x1x1xf32>
      %29 = vector.extract %28[0, 0, 0] : f32 from vector<1x1x1xf32>
      %30 = vector.broadcast %29 : f32 to vector<1x1xf32>
      %cst_19 = arith.constant 1.600000e+01 : f32
      %31 = vector.broadcast %cst_19 : f32 to vector<1x1xf32>
      %32 = arith.mulf %30, %31 : vector<1x1xf32>
      %33 = arith.addf %25, %32 : vector<1x1xf32>
      %c0_20 = arith.constant 0 : index
      %c0_21 = arith.constant 0 : index
      %34 = vector.load %arg7[%c0_20, %c0_21] : memref<1x1xf32, #tpu.memory_space<vmem>>, vector<1x1xf32>
      tpu.vector_store %arg7[%c0_20, %c0_21], %33 {strides = array<i32>} : memref<1x1xf32, #tpu.memory_space<vmem>>, vector<1x1xf32>,
      %c0_22 = arith.constant 0 : index
      %c0_23 = arith.constant 0 : index
      %35 = vector.load %arg6[%c0_22, %c0_23] : memref<1x1xf32, #tpu.memory_space<vmem>>, vector<1x1xf32>
      %36 = arith.subf %6, %4 : vector<32x16xf32>
      %37 = math.absf %36 : vector<32x16xf32>
      %38 = vector.broadcast %5 : vector<32x1xf32> to vector<32x16xf32>
      %39 = arith.mulf %37, %38 : vector<32x16xf32>
      %40 = vector.shape_cast %39 : vector<32x16xf32> to vector<1x32x16xf32>
      %cst_24 = arith.constant dense<0.000000e+00> : vector<1xf32>
      %41 = vector.multi_reduction <add>, %40, %cst_24 [1, 2] : vector<1x32x16xf32> to vector<1xf32>
      %42 = vector.shape_cast %41 : vector<1xf32> to vector<1x1x1xf32>
      %43 = vector.extract %42[0, 0, 0] : f32 from vector<1x1x1xf32>
      %44 = vector.broadcast %43 : f32 to vector<1x1xf32>
      %45 = arith.addf %35, %44 : vector<1x1xf32>
      %c0_25 = arith.constant 0 : index
      %c0_26 = arith.constant 0 : index
      %46 = vector.load %arg6[%c0_25, %c0_26] : memref<1x1xf32, #tpu.memory_space<vmem>>, vector<1x1xf32>
      tpu.vector_store %arg6[%c0_25, %c0_26], %45 {strides = array<i32>} : memref<1x1xf32, #tpu.memory_space<vmem>>, vector<1x1xf32>,
    } else {
    }
    %c0_i32_10 = arith.constant 0 : i32
    %10 = arith.cmpi eq, %arg0, %c0_i32_10 : i32
    %11 = arith.extui %10 : i1 to i32
    %c0_i32_11 = arith.constant 0 : i32
    %12 = arith.cmpi ne, %11, %c0_i32_11 : i32
    scf.if %12 {
      %13 = tpu.iota {dimensions = array<i32: 0>} : vector<32x16xi32>
      %c32_i32 = arith.constant 32 : i32
      %14 = arith.muli %arg0, %c32_i32 : i32
      %15 = vector.broadcast %14 : i32 to vector<32x16xi32>
      %16 = arith.addi %13, %15 : vector<32x16xi32>
      %c32_i32_12 = arith.constant 32 : i32
      %17 = vector.broadcast %c32_i32_12 : i32 to vector<32x16xi32>
      %18 = arith.cmpi slt, %16, %17 : vector<32x16xi32>
      %cst = arith.constant 0.000000e+00 : f32
      %19 = vector.shape_cast %5 : vector<32x1xf32> to vector<32x1xf32>
      %20 = vector.broadcast %19 : vector<32x1xf32> to vector<32x16xf32>
      %21 = vector.broadcast %cst : f32 to vector<32x16xf32>
      %22 = arith.select %18, %20, %21 : vector<32x16xi1>, vector<32x16xf32>
      %c0_13 = arith.constant 0 : index
      %c0_14 = arith.constant 0 : index
      %23 = vector.load %arg5[%c0_13, %c0_14] : memref<1x1xf32, #tpu.memory_space<vmem>>, vector<1x1xf32>
      %24 = arith.subf %3, %4 : vector<32x16xf32>
      %25 = math.absf %24 : vector<32x16xf32>
      %cst_15 = arith.constant 0.000000e+00 : f32
      %26 = vector.broadcast %cst_15 : f32 to vector<32x16xf32>
      %27 = arith.select %18, %25, %26 : vector<32x16xi1>, vector<32x16xf32>
      %28 = arith.mulf %27, %22 : vector<32x16xf32>
      %29 = vector.shape_cast %28 : vector<32x16xf32> to vector<1x32x16xf32>
      %cst_16 = arith.constant dense<0.000000e+00> : vector<1xf32>
      %30 = vector.multi_reduction <add>, %29, %cst_16 [1, 2] : vector<1x32x16xf32> to vector<1xf32>
      %31 = vector.shape_cast %30 : vector<1xf32> to vector<1x1x1xf32>
      %32 = vector.extract %31[0, 0, 0] : f32 from vector<1x1x1xf32>
      %33 = vector.broadcast %32 : f32 to vector<1x1xf32>
      %34 = arith.addf %23, %33 : vector<1x1xf32>
      %c0_17 = arith.constant 0 : index
      %c0_18 = arith.constant 0 : index
      %35 = vector.load %arg5[%c0_17, %c0_18] : memref<1x1xf32, #tpu.memory_space<vmem>>, vector<1x1xf32>
      tpu.vector_store %arg5[%c0_17, %c0_18], %34 {strides = array<i32>} : memref<1x1xf32, #tpu.memory_space<vmem>>, vector<1x1xf32>,
      %c0_19 = arith.constant 0 : index
      %c0_20 = arith.constant 0 : index
      %36 = vector.load %arg7[%c0_19, %c0_20] : memref<1x1xf32, #tpu.memory_space<vmem>>, vector<1x1xf32>
      %37 = vector.shape_cast %22 : vector<32x16xf32> to vector<1x32x16xf32>
      %cst_21 = arith.constant dense<0.000000e+00> : vector<1xf32>
      %38 = vector.multi_reduction <add>, %37, %cst_21 [1, 2] : vector<1x32x16xf32> to vector<1xf32>
      %39 = vector.shape_cast %38 : vector<1xf32> to vector<1x1x1xf32>
      %40 = vector.extract %39[0, 0, 0] : f32 from vector<1x1x1xf32>
      %41 = vector.broadcast %40 : f32 to vector<1x1xf32>
      %42 = arith.addf %36, %41 : vector<1x1xf32>
      %c0_22 = arith.constant 0 : index
      %c0_23 = arith.constant 0 : index
      %43 = vector.load %arg7[%c0_22, %c0_23] : memref<1x1xf32, #tpu.memory_space<vmem>>, vector<1x1xf32>
      tpu.vector_store %arg7[%c0_22, %c0_23], %42 {strides = array<i32>} : memref<1x1xf32, #tpu.memory_space<vmem>>, vector<1x1xf32>,
      %c0_24 = arith.constant 0 : index
      %c0_25 = arith.constant 0 : index
      %44 = vector.load %arg6[%c0_24, %c0_25] : memref<1x1xf32, #tpu.memory_space<vmem>>, vector<1x1xf32>
      %45 = arith.subf %6, %4 : vector<32x16xf32>
      %46 = math.absf %45 : vector<32x16xf32>
      %cst_26 = arith.constant 0.000000e+00 : f32
      %47 = vector.broadcast %cst_26 : f32 to vector<32x16xf32>
      %48 = arith.select %18, %46, %47 : vector<32x16xi1>, vector<32x16xf32>
      %49 = arith.mulf %48, %22 : vector<32x16xf32>
      %50 = vector.shape_cast %49 : vector<32x16xf32> to vector<1x32x16xf32>
      %cst_27 = arith.constant dense<0.000000e+00> : vector<1xf32>
      %51 = vector.multi_reduction <add>, %50, %cst_27 [1, 2] : vector<1x32x16xf32> to vector<1xf32>
      %52 = vector.shape_cast %51 : vector<1xf32> to vector<1x1x1xf32>
      %53 = vector.extract %52[0, 0, 0] : f32 from vector<1x1x1xf32>
      %54 = vector.broadcast %53 : f32 to vector<1x1xf32>
      %55 = arith.addf %44, %54 : vector<1x1xf32>
      %c0_28 = arith.constant 0 : index
      %c0_29 = arith.constant 0 : index
      %56 = vector.load %arg6[%c0_28, %c0_29] : memref<1x1xf32, #tpu.memory_space<vmem>>, vector<1x1xf32>
      tpu.vector_store %arg6[%c0_28, %c0_29], %55 {strides = array<i32>} : memref<1x1xf32, #tpu.memory_space<vmem>>, vector<1x1xf32>,
    } else {
    }
    return
  }
  func.func @transform_0(%arg0: i32) -> (i32, i32) {
    %c0_i32 = arith.constant 0 : i32
    %c0_i32_0 = arith.constant 0 : i32
    return %arg0, %c0_i32 : i32, i32
  }
  func.func @transform_1(%arg0: i32) -> (i32, i32) {
    %c0_i32 = arith.constant 0 : i32
    %c0_i32_0 = arith.constant 0 : i32
    return %arg0, %c0_i32 : i32, i32
  }
  func.func @transform_2(%arg0: i32) -> (i32, i32) {
    %c0_i32 = arith.constant 0 : i32
    %c0_i32_0 = arith.constant 0 : i32
    return %arg0, %c0_i32 : i32, i32
  }
  func.func @transform_3(%arg0: i32) -> (i32, i32) {
    %c0_i32 = arith.constant 0 : i32
    %c0_i32_0 = arith.constant 0 : i32
    return %arg0, %c0_i32 : i32, i32
  }
  func.func @transform_4(%arg0: i32) -> (i32, i32) {
    %c0_i32 = arith.constant 0 : i32
    %c0_i32_0 = arith.constant 0 : i32
    %c0_i32_1 = arith.constant 0 : i32
    return %c0_i32, %c0_i32_0 : i32, i32
  }
  func.func @transform_5(%arg0: i32) -> (i32, i32) {
    %c0_i32 = arith.constant 0 : i32
    %c0_i32_0 = arith.constant 0 : i32
    %c0_i32_1 = arith.constant 0 : i32
    return %c0_i32, %c0_i32_0 : i32, i32
  }
  func.func @transform_6(%arg0: i32) -> (i32, i32) {
    %c0_i32 = arith.constant 0 : i32
    %c0_i32_0 = arith.constant 0 : i32
    %c0_i32_1 = arith.constant 0 : i32
    return %c0_i32, %c0_i32_0 : i32, i32
  }
}

</mosaic_0001>

<llo_original>
// kernel: tpu_custom_call.1
$region0: #{tpu_custom_call.1}
  #allocation0 [shape = 'u32[]', space=smem, size = 0x4, offset = 0x4, fixed_abs, tag = 'smem constant byte address 0x4 - core index']
  #allocation1 [shape = 'u32[144,128]{1,0:T(1,128)}', space=vmem, size = 0x12000, scoped, tag = 'internal scratch']
  %s0 = inlined_call_operand.vmem [shape: f32[32,16], index: 0, kind: input, shape index: {}]
  %s1 = inlined_call_operand.vmem [shape: f32[32,16], index: 1, kind: input, shape index: {}]
  %s2 = inlined_call_operand.vmem [shape: f32[32,16], index: 2, kind: input, shape index: {}]
  %s3 = inlined_call_operand.vmem [shape: f32[32,1], index: 3, kind: input, shape index: {}]
  %s4 = inlined_call_operand.hbm [shape: f32[1,1], index: 4, kind: output, shape index: {0}]
  %s5 = inlined_call_operand.hbm [shape: f32[1,1], index: 5, kind: output, shape index: {1}]
  %s6 = inlined_call_operand.hbm [shape: f32[1,1], index: 6, kind: output, shape index: {2}]
  %7 = xla_tuple %s4, %s5, %s6
  %s8 = sld [smem:[#allocation0]]
  $region54: #{tpu_custom_call.1} parent=0
    _
  %s10 = ssub.s32 1, %s8
  %s11 = scalar_select 0, %s10, %s8
  $region1: #{tpu_custom_call.1} parent=0
    #allocation2 [shape = 'u8[512]{0}', space=vmem, size = 0x400, scoped, tag = 'output window, operand 0, single buffered']
    #allocation3 [shape = 's32[1]{0}', space=sflag, size = 0x4, scoped, tag = 'scoped memory for tpu_custom_call.1']
    #allocation4 [shape = 'u8[512]{0}', space=vmem, size = 0x400, scoped, tag = 'output window, operand 1, single buffered']
    #allocation5 [shape = 's32[1]{0}', space=sflag, size = 0x4, scoped, tag = 'scoped memory for tpu_custom_call.1']
    #allocation6 [shape = 'u8[512]{0}', space=vmem, size = 0x400, scoped, tag = 'output window, operand 2, single buffered']
    %12 = vsyncpa [#allocation3], 0
    %13 = vsyncpa [#allocation5], 0
    // Predicated region
    $region2: #{tpu_custom_call.1} parent=1 // pred_check
      _
    $region3: #{tpu_custom_call.1} parent=1 // pred_check_branch
      %15 = sbr.rel (0) target = $region5
    $region4: #{tpu_custom_call.1} parent=1 // pred_region
      _
    $region5: #{tpu_custom_call.1} parent=1 // pred_fallthru
      _
    // Predicated region
    $region6: #{tpu_custom_call.1} parent=1 // pred_check
      _
    $region7: #{tpu_custom_call.1} parent=1 // pred_check_branch
      %17 = sbr.rel (0) target = $region9
    $region8: #{tpu_custom_call.1} parent=1 // pred_region
      _
    $region9: #{tpu_custom_call.1} parent=1 // pred_fallthru
      _
    // Predicated region
    $region10: #{tpu_custom_call.1} parent=1 // pred_check
      _
    $region11: #{tpu_custom_call.1} parent=1 // pred_check_branch
      %19 = sbr.rel (0) target = $region13
    $region12: #{tpu_custom_call.1} parent=1 // pred_region
      _
    $region13: #{tpu_custom_call.1} parent=1 // pred_fallthru
      _
    // Predicated region
    $region14: #{tpu_custom_call.1} parent=1 // pred_check
      _
    $region15: #{tpu_custom_call.1} parent=1 // pred_check_branch
      %21 = sbr.rel (0) target = $region17
    $region16: #{tpu_custom_call.1} parent=1 // pred_region
      _
    $region17: #{tpu_custom_call.1} parent=1 // pred_fallthru
      _
    %p22 = scmp.eq.s32.totalorder 0, 0
    // Predicated region
    $region18: #{tpu_custom_call.1} parent=1 // pred_check
      %p23 = pneg %p22
    $region19: #{tpu_custom_call.1} parent=1 // pred_check_branch
      %25 = sbr.rel (%p23) target = $region21
    $region20: #{tpu_custom_call.1} parent=1 // pred_region
      %vm26 = vcmask 0
      %27 = vst.msk [vmem:[#allocation2] sm:$0x1] %vm26, 0.0
      %28 = vst.msk [vmem:[#allocation6] sm:$0x1] %vm26, 0.0
      %29 = vst.msk [vmem:[#allocation4] sm:$0x1] %vm26, 0.0
    $region21: #{tpu_custom_call.1} parent=1 // pred_fallthru
      _
    %v30 = vld [vmem:[%s0] sm:$0xff]
    %v31 = vld [vmem:[%s0 + $0x8] sm:$0xff]
    %v32 = vld [vmem:[%s0 + $0x10] sm:$0xff]
    %v33 = vld [vmem:[%s0 + $0x18] sm:$0xff]
    %v34 = vld [vmem:[%s2] sm:$0xff]
    %v35 = vld [vmem:[%s2 + $0x8] sm:$0xff]
    %v36 = vld [vmem:[%s2 + $0x10] sm:$0xff]
    %v37 = vld [vmem:[%s2 + $0x18] sm:$0xff]
    %v38 = vld [vmem:[%s3] sm:$0xff]
    %v39 = vld [vmem:[%s3 + $0x8] sm:$0xff]
    %v40 = vld [vmem:[%s3 + $0x10] sm:$0xff]
    %v41 = vld [vmem:[%s3 + $0x18] sm:$0xff]
    %v42 = vld [vmem:[%s1] sm:$0xff]
    %v43 = vld [vmem:[%s1 + $0x8] sm:$0xff]
    %v44 = vld [vmem:[%s1 + $0x10] sm:$0xff]
    %v45 = vld [vmem:[%s1 + $0x18] sm:$0xff]
    %p46 = scmp.lt.s32.totalorder 0, 0
    // Predicated region
    $region22: #{tpu_custom_call.1} parent=1 // pred_check
      %p47 = pneg %p46
    $region23: #{tpu_custom_call.1} parent=1 // pred_check_branch
      %49 = sbr.rel (%p47) target = $region25
    $region24: #{tpu_custom_call.1} parent=1 // pred_region
      %v50 = vld [vmem:[#allocation2] sm:$0x1]
      %v51 = vsub.f32 %v30, %v34
      %v52 = vsub.f32 %v31, %v35
      %v53 = vsub.f32 %v32, %v36
      %v54 = vsub.f32 %v33, %v37
      %v55 = vand.u32 2147483647, %v51
      %v56 = vand.u32 2147483647, %v52
      %v57 = vand.u32 2147483647, %v53
      %v58 = vand.u32 2147483647, %v54
      %60 = vset.pattern.permute.xlu0 0
      %61 = vperm.xlu0 %60, %v38
      %v62 = vpop.permute.xlu0 %61
      %65 = vset.pattern.permute.xlu0 0
      %66 = vperm.xlu0 %65, %v39
      %v67 = vpop.permute.xlu0 %66
      %70 = vset.pattern.permute.xlu0 0
      %71 = vperm.xlu0 %70, %v40
      %v72 = vpop.permute.xlu0 %71
      %75 = vset.pattern.permute.xlu0 0
      %76 = vperm.xlu0 %75, %v41
      %v77 = vpop.permute.xlu0 %76
      %v79 = vmul.f32 %v55, %v62
      %v80 = vmul.f32 %v56, %v67
      %v81 = vmul.f32 %v57, %v72
      %v82 = vmul.f32 %v58, %v77
      %vm83 = vcmask 130048
      %v84 = vsel %vm83, %v79, 0.0
      %v85 = vsel %vm83, %v80, 0.0
      %v86 = vadd.f32 %v84, %v85
      %v87 = vsel %vm83, %v81, 0.0
      %v88 = vadd.f32 %v86, %v87
      %v89 = vsel %vm83, %v82, 0.0
      %v90 = vadd.f32 %v88, %v89
      %91 = vadd.xlane.f32.xlu0 %v90
      %v92 = vpop.xlane.xlu0 %91
      %v93 = vrot.slane %v92, 4
      %v94 = vadd.f32 %v92, %v93
      %v95 = vrot.slane %v94, 2
      %v96 = vadd.f32 %v94, %v95
      %v97 = vrot.slane %v96, 1
      %v98 = vadd.f32 %v96, %v97
      %s99 = vtos %v98
      %v100 = vstv %s99
      %v101 = vadd.f32 %v50, %v100
      %vm102 = vcmask 0
      %103 = vst.msk [vmem:[#allocation2] sm:$0x1] %vm102, %v101
      %v104 = vld [vmem:[#allocation6] sm:$0x1]
      %vm105 = vcmask 7168
      %v106 = vsel %vm105, %v38, 0.0
      %v107 = vsel %vm105, %v39, 0.0
      %v108 = vadd.f32 %v106, %v107
      %v109 = vsel %vm105, %v40, 0.0
      %v110 = vadd.f32 %v108, %v109
      %v111 = vsel %vm105, %v41, 0.0
      %v112 = vadd.f32 %v110, %v111
      %113 = vadd.xlane.f32.xlu0 %v112
      %v114 = vpop.xlane.xlu0 %113
      %v115 = vrot.slane %v114, 4
      %v116 = vadd.f32 %v114, %v115
      %v117 = vrot.slane %v116, 2
      %v118 = vadd.f32 %v116, %v117
      %v119 = vrot.slane %v118, 1
      %v120 = vadd.f32 %v118, %v119
      %s121 = vtos %v120
      %v122 = vstv %s121
      %v123 = vmul.f32 %v122, 16.0
      %v124 = vadd.f32 %v104, %v123
      %125 = vst.msk [vmem:[#allocation6] sm:$0x1] %vm102, %v124
      %v126 = vld [vmem:[#allocation4] sm:$0x1]
      %v127 = vsub.f32 %v42, %v34
      %v128 = vsub.f32 %v43, %v35
      %v129 = vsub.f32 %v44, %v36
      %v130 = vsub.f32 %v45, %v37
      %v131 = vand.u32 2147483647, %v127
      %v132 = vand.u32 2147483647, %v128
      %v133 = vand.u32 2147483647, %v129
      %v134 = vand.u32 2147483647, %v130
      %v135 = vmul.f32 %v131, %v62
      %v136 = vmul.f32 %v132, %v67
      %v137 = vmul.f32 %v133, %v72
      %v138 = vmul.f32 %v134, %v77
      %v139 = vsel %vm83, %v135, 0.0
      %v140 = vsel %vm83, %v136, 0.0
      %v141 = vadd.f32 %v139, %v140
      %v142 = vsel %vm83, %v137, 0.0
      %v143 = vadd.f32 %v141, %v142
      %v144 = vsel %vm83, %v138, 0.0
      %v145 = vadd.f32 %v143, %v144
      %146 = vadd.xlane.f32.xlu0 %v145
      %v147 = vpop.xlane.xlu0 %146
      %v148 = vrot.slane %v147, 4
      %v149 = vadd.f32 %v147, %v148
      %v150 = vrot.slane %v149, 2
      %v151 = vadd.f32 %v149, %v150
      %v152 = vrot.slane %v151, 1
      %v153 = vadd.f32 %v151, %v152
      %s154 = vtos %v153
      %v155 = vstv %s154
      %v156 = vadd.f32 %v126, %v155
      %157 = vst.msk [vmem:[#allocation4] sm:$0x1] %vm102, %v156
    $region25: #{tpu_custom_call.1} parent=1 // pred_fallthru
      _
    // Predicated region
    $region26: #{tpu_custom_call.1} parent=1 // pred_check
      %p158 = pneg %p22
    $region27: #{tpu_custom_call.1} parent=1 // pred_check_branch
      %160 = sbr.rel (%p158) target = $region29
    $region28: #{tpu_custom_call.1} parent=1 // pred_region
      %v161 = vlaneseq
      %v162 = vshrl.u32 %v161, 7
      %v163 = vadd.s32 %v162, 8
      %v164 = vadd.s32 %v162, 16
      %v165 = vadd.s32 %v162, 24
      %s166 = smul.u32 0, 32
      %v167 = vstv %s166
      %v168 = vadd.s32 %v162, %v167
      %v169 = vadd.s32 %v163, %v167
      %v170 = vadd.s32 %v164, %v167
      %v171 = vadd.s32 %v165, %v167
      %vm172 = vcmp.lt.s32.totalorder %v168, 32
      %vm173 = vcmp.lt.s32.totalorder %v169, 32
      %vm174 = vcmp.lt.s32.totalorder %v170, 32
      %vm175 = vcmp.lt.s32.totalorder %v171, 32
      %177 = vset.pattern.permute.xlu0 0
      %178 = vperm.xlu0 %177, %v38
      %v179 = vpop.permute.xlu0 %178
      %182 = vset.pattern.permute.xlu0 0
      %183 = vperm.xlu0 %182, %v39
      %v184 = vpop.permute.xlu0 %183
      %187 = vset.pattern.permute.xlu0 0
      %188 = vperm.xlu0 %187, %v40
      %v189 = vpop.permute.xlu0 %188
      %192 = vset.pattern.permute.xlu0 0
      %193 = vperm.xlu0 %192, %v41
      %v194 = vpop.permute.xlu0 %193
      %v196 = vsel %vm172, %v179, 0.0
      %v197 = vsel %vm173, %v184, 0.0
      %v198 = vsel %vm174, %v189, 0.0
      %v199 = vsel %vm175, %v194, 0.0
      %v200 = vld [vmem:[#allocation2] sm:$0x1]
      %v201 = vsub.f32 %v30, %v34
      %v202 = vsub.f32 %v31, %v35
      %v203 = vsub.f32 %v32, %v36
      %v204 = vsub.f32 %v33, %v37
      %v205 = vand.u32 2147483647, %v201
      %v206 = vand.u32 2147483647, %v202
      %v207 = vand.u32 2147483647, %v203
      %v208 = vand.u32 2147483647, %v204
      %v209 = vsel %vm172, %v205, 0.0
      %v210 = vsel %vm173, %v206, 0.0
      %v211 = vsel %vm174, %v207, 0.0
      %v212 = vsel %vm175, %v208, 0.0
      %v213 = vmul.f32 %v209, %v196
      %v214 = vmul.f32 %v210, %v197
      %v215 = vmul.f32 %v211, %v198
      %v216 = vmul.f32 %v212, %v199
      %vm217 = vcmask 130048
      %v218 = vsel %vm217, %v213, 0.0
      %v219 = vsel %vm217, %v214, 0.0
      %v220 = vadd.f32 %v218, %v219
      %v221 = vsel %vm217, %v215, 0.0
      %v222 = vadd.f32 %v220, %v221
      %v223 = vsel %vm217, %v216, 0.0
      %v224 = vadd.f32 %v222, %v223
      %225 = vadd.xlane.f32.xlu0 %v224
      %v226 = vpop.xlane.xlu0 %225
      %v227 = vrot.slane %v226, 4
      %v228 = vadd.f32 %v226, %v227
      %v229 = vrot.slane %v228, 2
      %v230 = vadd.f32 %v228, %v229
      %v231 = vrot.slane %v230, 1
      %v232 = vadd.f32 %v230, %v231
      %s233 = vtos %v232
      %v234 = vstv %s233
      %v235 = vadd.f32 %v200, %v234
      %vm236 = vcmask 0
      %237 = vst.msk [vmem:[#allocation2] sm:$0x1] %vm236, %v235
      %v238 = vld [vmem:[#allocation6] sm:$0x1]
      %v239 = vsel %vm217, %v196, 0.0
      %v240 = vsel %vm217, %v197, 0.0
      %v241 = vadd.f32 %v239, %v240
      %v242 = vsel %vm217, %v198, 0.0
      %v243 = vadd.f32 %v241, %v242
      %v244 = vsel %vm217, %v199, 0.0
      %v245 = vadd.f32 %v243, %v244
      %246 = vadd.xlane.f32.xlu0 %v245
      %v247 = vpop.xlane.xlu0 %246
      %v248 = vrot.slane %v247, 4
      %v249 = vadd.f32 %v247, %v248
      %v250 = vrot.slane %v249, 2
      %v251 = vadd.f32 %v249, %v250
      %v252 = vrot.slane %v251, 1
      %v253 = vadd.f32 %v251, %v252
      %s254 = vtos %v253
      %v255 = vstv %s254
      %v256 = vadd.f32 %v238, %v255
      %257 = vst.msk [vmem:[#allocation6] sm:$0x1] %vm236, %v256
      %v258 = vld [vmem:[#allocation4] sm:$0x1]
      %v259 = vsub.f32 %v42, %v34
      %v260 = vsub.f32 %v43, %v35
      %v261 = vsub.f32 %v44, %v36
      %v262 = vsub.f32 %v45, %v37
      %v263 = vand.u32 2147483647, %v259
      %v264 = vand.u32 2147483647, %v260
      %v265 = vand.u32 2147483647, %v261
      %v266 = vand.u32 2147483647, %v262
      %v267 = vsel %vm172, %v263, 0.0
      %v268 = vsel %vm173, %v264, 0.0
      %v269 = vsel %vm174, %v265, 0.0
      %v270 = vsel %vm175, %v266, 0.0
      %v271 = vmul.f32 %v267, %v196
      %v272 = vmul.f32 %v268, %v197
      %v273 = vmul.f32 %v269, %v198
      %v274 = vmul.f32 %v270, %v199
      %v275 = vsel %vm217, %v271, 0.0
      %v276 = vsel %vm217, %v272, 0.0
      %v277 = vadd.f32 %v275, %v276
      %v278 = vsel %vm217, %v273, 0.0
      %v279 = vadd.f32 %v277, %v278
      %v280 = vsel %vm217, %v274, 0.0
      %v281 = vadd.f32 %v279, %v280
      %282 = vadd.xlane.f32.xlu0 %v281
      %v283 = vpop.xlane.xlu0 %282
      %v284 = vrot.slane %v283, 4
      %v285 = vadd.f32 %v283, %v284
      %v286 = vrot.slane %v285, 2
      %v287 = vadd.f32 %v285, %v286
      %v288 = vrot.slane %v287, 1
      %v289 = vadd.f32 %v287, %v288
      %s290 = vtos %v289
      %v291 = vstv %s290
      %v292 = vadd.f32 %v258, %v291
      %293 = vst.msk [vmem:[#allocation4] sm:$0x1] %vm236, %v292
    $region29: #{tpu_custom_call.1} parent=1 // pred_fallthru
      _
    // Predicated region
    $region30: #{tpu_custom_call.1} parent=1 // pred_check
      _
    $region31: #{tpu_custom_call.1} parent=1 // pred_check_branch
      %295 = sbr.rel (0) target = $region33
    $region32: #{tpu_custom_call.1} parent=1 // pred_region
      %s297 = ssub.s32 16, 16
      %298 = vsyncadd [#allocation3], %s297
      %s300 = sshll.u32 [#allocation2], 4
      %s301 = int_to_ptr.vmem [resolvable:$true] %s300
      %303 = dma.vmem_to_hbm [thread:$0]  %s301, 16, %s4, [#allocation3]
    $region33: #{tpu_custom_call.1} parent=1 // pred_fallthru
      _
    // Predicated region
    $region34: #{tpu_custom_call.1} parent=1 // pred_check
      _
    $region35: #{tpu_custom_call.1} parent=1 // pred_check_branch
      %305 = sbr.rel (0) target = $region37
    $region36: #{tpu_custom_call.1} parent=1 // pred_region
      %s307 = ssub.s32 16, 16
      %308 = vsyncadd [#allocation5], %s307
      %s310 = sshll.u32 [#allocation4], 4
      %s311 = int_to_ptr.vmem [resolvable:$true] %s310
      %313 = dma.vmem_to_hbm [thread:$0]  %s311, 16, %s5, [#allocation5]
    $region37: #{tpu_custom_call.1} parent=1 // pred_fallthru
      _
    // Predicated region
    $region38: #{tpu_custom_call.1} parent=1 // pred_check
      _
    $region39: #{tpu_custom_call.1} parent=1 // pred_check_branch
      %315 = sbr.rel (0) target = $region41
    $region40: #{tpu_custom_call.1} parent=1 // pred_region
      %s317 = ssub.s32 16, 16
      %318 = vsyncadd [#allocation5], %s317
      %s320 = sshll.u32 [#allocation6], 4
      %s321 = int_to_ptr.vmem [resolvable:$true] %s320
      %323 = dma.vmem_to_hbm [thread:$0]  %s321, 16, %s6, [#allocation5]
    $region41: #{tpu_custom_call.1} parent=1 // pred_fallthru
      _
    // Predicated region
    $region42: #{tpu_custom_call.1} parent=1 // pred_check
      _
    $region43: #{tpu_custom_call.1} parent=1 // pred_check_branch
      %325 = sbr.rel (0) target = $region45
    $region44: #{tpu_custom_call.1} parent=1 // pred_region
      %326 = dma.done [#allocation3], 16
    $region45: #{tpu_custom_call.1} parent=1 // pred_fallthru
      _
    // Predicated region
    $region46: #{tpu_custom_call.1} parent=1 // pred_check
      _
    $region47: #{tpu_custom_call.1} parent=1 // pred_check_branch
      %328 = sbr.rel (0) target = $region49
    $region48: #{tpu_custom_call.1} parent=1 // pred_region
      %329 = dma.done [#allocation5], 16
    $region49: #{tpu_custom_call.1} parent=1 // pred_fallthru
      _
    // Predicated region
    $region50: #{tpu_custom_call.1} parent=1 // pred_check
      _
    $region51: #{tpu_custom_call.1} parent=1 // pred_check_branch
      %331 = sbr.rel (0) target = $region53
    $region52: #{tpu_custom_call.1} parent=1 // pred_region
      %332 = dma.done [#allocation5], 16
    $region53: #{tpu_custom_call.1} parent=1 // pred_fallthru
      _
    %333 = vsyncpa [#allocation3], 1
    %334 = vsyncpa [#allocation5], 1

</llo_original>
